<compile_context>
chip_gen: v5e
topology: v5e:2x2
jax: 0.10.0
libtpu: 0.0.40
codegen_flags: <defaults>
</compile_context>

<pallas_src>
import functools

import jax
import jax.numpy as jnp
from jax import lax
from jax.experimental import pallas as pl
from jax.experimental.pallas import tpu as pltpu

_LANES = 512                       # lane-dense last dim (multiple of 128 -> wide unmasked stores)
_MAX_TILE_ROWS = 2048              # (2048, 512) f32 tile = 4 MiB per pipeline buffer
_VMEM_LIMIT = 48 * 1024 * 1024     # explicit: v5e default scoped VMEM is only 16 MiB
_PALLAS_MIN_ELEMENTS = 1 << 18     # below this, pure fused XLA is faster than a kernel launch


def _stable_softplus_pair(x):
    """softplus(x), softplus(-x) computed stably (one exp, one log1p)."""
    abs_x = jnp.abs(x)
    log1p_term = jnp.log1p(jnp.exp(-abs_x))
    sp_pos = jnp.maximum(x, 0.0) + log1p_term     # softplus(x)  = -log(1 - sigmoid(x))
    sp_neg = jnp.maximum(-x, 0.0) + log1p_term    # softplus(-x) = -log(sigmoid(x))
    return sp_pos, sp_neg


def _pow_gamma(q, gamma):
    g = float(gamma)
    if g == 2.0:
        return q * q
    if g == 1.0:
        return q
    if g == 0.0:
        return jnp.ones_like(q)
    if g == int(g) and 0 < g <= 8:
        out = q
        for _ in range(int(g) - 1):
            out = out * q
        return out
    return q ** g


def _fused_kernel(pred_ref, tgt_ref, focal_ref, psum_ref, *,
                  pos_weight, alpha, gamma, total, tile_rows, need_mask):
    """Per tile: per-element focal loss + partial sums (Σbce, Σ(pb·yi), Σ(pb+yi))."""
    i = pl.program_id(0)
    x = pred_ref[...].astype(jnp.float32)
    y = tgt_ref[...].astype(jnp.float32)

    sp_pos, sp_neg = _stable_softplus_pair(x)

    # --- per-element focal loss (torchvision sigmoid_focal_loss, reduction='none') ---
    ce = y * sp_neg + (1.0 - y) * sp_pos
    p = jnp.exp(-sp_neg)                       # sigmoid(x) without a reciprocal (EUP-lean)
    p_t = p * y + (1.0 - p) * (1.0 - y)
    mod = _pow_gamma(1.0 - p_t, gamma)
    alpha_t = alpha * y + (1.0 - alpha) * (1.0 - y)
    focal = alpha_t * ce * mod
    focal_ref[...] = focal.astype(focal_ref.dtype)

    # --- partial sums for BCEWithLogits(mean, pos_weight) and Dice ---
    bce = pos_weight * y * sp_neg + (1.0 - y) * sp_pos
    pb = (x >= 0.0).astype(jnp.float32)        # sigmoid(x) >= 0.5  <=>  x >= 0 (VPU compare)
    yi = y.astype(jnp.int32).astype(jnp.float32)   # PyTorch Dice uses target.int()
    tp_e = pb * yi                             # true positives
    den_e = pb + yi                            # Σpb + Σyi = 2*tp + fp + fn

    if need_mask:
        # Mask the ragged tail (explicit zero-pad columns and/or Pallas OOB rows
        # in the last tile) out of every reduction.  jnp.where selects, so any
        # garbage (NaN/Inf) read past the array end cannot poison the sums.
        shape = x.shape
        row = lax.broadcasted_iota(jnp.int32, shape, 0) + i * tile_rows
        lane = lax.broadcasted_iota(jnp.int32, shape, 1)
        full_rows = total // _LANES
        rem = total % _LANES
        mask = row < full_rows
        if rem:
            mask = mask | ((row == full_rows) & (lane < rem))
        zero = jnp.float32(0.0)
        bce = jnp.where(mask, bce, zero)
        tp_e = jnp.where(mask, tp_e, zero)
        den_e = jnp.where(mask, den_e, zero)

    s_bce = jnp.sum(bce)
    s_tp = jnp.sum(tp_e)
    s_den = jnp.sum(den_e)

    # Stash the 3 partial sums into lanes 0..2 of sublane 0 of this tile's
    # (8, 128) partial-sum record (pairwise-combined in XLA afterwards).
    sub = lax.broadcasted_iota(jnp.int32, (8, 128), 0)
    ln = lax.broadcasted_iota(jnp.int32, (8, 128), 1)
    r0 = sub == 0
    rec = jnp.where(r0 & (ln == 0), s_bce, 0.0)
    rec = rec + jnp.where(r0 & (ln == 1), s_tp, 0.0)
    rec = rec + jnp.where(r0 & (ln == 2), s_den, 0.0)
    psum_ref[0] = rec


def _xla_loss(pred, target, *, weight, alpha, gamma):
    """Small-input fast path: same math, pure fused XLA."""
    x = pred.astype(jnp.float32)
    y = target.astype(jnp.float32)
    sp_pos, sp_neg = _stable_softplus_pair(x)
    bce_mean = jnp.mean(weight * y * sp_neg + (1.0 - y) * sp_pos)
    pb = (x >= 0.0).astype(jnp.float32)
    yi = y.astype(jnp.int32).astype(jnp.float32)
    tp = jnp.sum(pb * yi)
    den = jnp.sum(pb + yi)
    dice = jnp.where(den > 0.0, 2.0 * tp / jnp.maximum(den, 1.0), 0.0)
    ce = y * sp_neg + (1.0 - y) * sp_pos
    p = jnp.exp(-sp_neg)
    p_t = p * y + (1.0 - p) * (1.0 - y)
    focal = (alpha * y + (1.0 - alpha) * (1.0 - y)) * ce * _pow_gamma(1.0 - p_t, gamma)
    return (focal + bce_mean + (1.0 - dice)).astype(pred.dtype)


def bce_dice_focal_loss(pred, target, *, weight=2.0, alpha=0.25, gamma=2.0,
                        force_pallas=False, max_tile_rows=_MAX_TILE_ROWS):
    """pred, target: same-shaped arrays (any float dtype); target holds 0/1 labels."""
    orig_shape = pred.shape
    out_dtype = pred.dtype
    total = int(pred.size)

    if total == 0:
        return jnp.zeros(orig_shape, out_dtype)

    if not force_pallas and total < _PALLAS_MIN_ELEMENTS:
        return _xla_loss(pred, target, weight=weight, alpha=alpha, gamma=gamma)

    rows = pl.cdiv(total, _LANES)
    if rows <= max_tile_rows:
        tile_r = rows                                # single tile; block == full array dims
    else:
        tile_r = max(8, (int(max_tile_rows) // 8) * 8)
    num_tiles = pl.cdiv(rows, tile_r)
    padded_total = rows * _LANES
    need_mask = (padded_total != total) or (rows % tile_r != 0)

    pred_flat = pred.reshape(-1)
    tgt_flat = target.reshape(-1)
    if padded_total != total:
        # TODO(synk): a minimal zero-pad copy (< 512 elements of pad) is still
        # needed when numel is not a multiple of 512 to form the lane-dense
        # (rows, 512) view; the padded elements are masked inside the kernel.
        pad = padded_total - total
        pred_flat = jnp.pad(pred_flat, (0, pad))
        tgt_flat = jnp.pad(tgt_flat, (0, pad))
    pred2d = pred_flat.reshape(rows, _LANES)
    tgt2d = tgt_flat.reshape(rows, _LANES)

    tile_spec = pl.BlockSpec((tile_r, _LANES), lambda i: (i, 0))
    psum_spec = pl.BlockSpec((1, 8, 128), lambda i: (i, 0, 0))

    focal2d, partials = pl.pallas_call(
        functools.partial(
            _fused_kernel,
            pos_weight=float(weight), alpha=float(alpha), gamma=float(gamma),
            total=total, tile_rows=tile_r, need_mask=need_mask),
        out_shape=(
            jax.ShapeDtypeStruct((rows, _LANES), out_dtype),       # per-element focal
            jax.ShapeDtypeStruct((num_tiles, 8, 128), jnp.float32),  # per-tile partial sums
        ),
        grid=(num_tiles,),
        in_specs=[tile_spec, tile_spec],
        out_specs=(tile_spec, psum_spec),
        compiler_params=pltpu.CompilerParams(
            dimension_semantics=("parallel",),
            vmem_limit_bytes=_VMEM_LIMIT,
        ),
    )(pred2d, tgt2d)

    # Tiny finalize (fuses in XLA): pairwise-combine per-tile partials, form the
    # broadcast scalar, and add it to the focal tensor in a single fused pass.
    sums = jnp.sum(partials[:, 0, :3], axis=0)
    bce_mean = sums[0] / jnp.float32(total)
    dice = jnp.where(sums[2] > 0.0, 2.0 * sums[1] / jnp.maximum(sums[2], 1.0), 0.0)
    extra = bce_mean + (1.0 - dice)

    out2d = (focal2d + extra).astype(out_dtype)
    if padded_total != total:
        return out2d.reshape(-1)[:total].reshape(orig_shape)
    return out2d.reshape(orig_shape)


def _reference(pred, target, *, weight=2.0, alpha=0.25, gamma=2.0):
    x = pred.astype(jnp.float32)
    y = target.astype(jnp.float32)
    sp_pos = jax.nn.softplus(x)
    sp_neg = jax.nn.softplus(-x)
    bce_mean = jnp.mean(weight * y * sp_neg + (1.0 - y) * sp_pos)
    p = jax.nn.sigmoid(x)
    pb = (p >= 0.5).astype(jnp.float32)
    yi = y.astype(jnp.int32).astype(jnp.float32)   # target.int() as in PyTorch Dice
    tp = jnp.sum(pb * yi)
    fp = jnp.sum(pb * (1.0 - yi))
    fn = jnp.sum((1.0 - pb) * yi)
    denom = 2.0 * tp + fp + fn
    dice = jnp.where(denom > 0.0, 2.0 * tp / jnp.maximum(denom, 1.0), 0.0)
    ce = y * sp_neg + (1.0 - y) * sp_pos
    p_t = p * y + (1.0 - p) * (1.0 - y)
    focal = (alpha * y + (1.0 - alpha) * (1.0 - y)) * ce * (1.0 - p_t) ** gamma
    return focal + bce_mean + (1.0 - dice)


if __name__ == "__main__":
    key = jax.random.PRNGKey(0)
    k1, k2, k3, k4, k5, k6 = jax.random.split(key, 6)

    # Case 1: typical small NCHW segmentation input; force the Pallas path.
    B, C, H, W = 2, 4, 16, 16
    pred = jax.random.normal(k1, (B, C, H, W), dtype=jnp.float32) * 2.0
    target = jax.random.bernoulli(k2, p=0.3, shape=(B, C, H, W)).astype(jnp.float32)
    out = jax.block_until_ready(
        bce_dice_focal_loss(pred, target, weight=2.0, alpha=0.25, gamma=2.0,
                            force_pallas=True))
    ref = _reference(pred, target, weight=2.0, alpha=0.25, gamma=2.0)
    assert out.shape == pred.shape
    assert jnp.allclose(out, ref, atol=2e-5, rtol=2e-5), "mismatch vs reference (case 1)"

    # Case 2: odd element count -> exercises the minimal pad + in-kernel masking path.
    pred2 = jax.random.normal(k3, (2, 3, 15, 17), dtype=jnp.float32) * 2.0
    target2 = jax.random.bernoulli(k4, p=0.3, shape=(2, 3, 15, 17)).astype(jnp.float32)
    out2 = jax.block_until_ready(bce_dice_focal_loss(pred2, target2, force_pallas=True))
    ref2 = _reference(pred2, target2)
    assert out2.shape == pred2.shape
    assert jnp.allclose(out2, ref2, atol=2e-5, rtol=2e-5), "mismatch vs reference (case 2)"

    # Case 3: multi-tile "parallel" grid with a ragged last tile (small max_tile_rows
    # so the OOB-row masking + per-tile partial-sum combine is exercised cheaply).
    pred3 = jax.random.normal(k5, (2, 4, 40, 32), dtype=jnp.float32) * 2.0
    target3 = jax.random.bernoulli(k6, p=0.3, shape=(2, 4, 40, 32)).astype(jnp.float32)
    out3 = jax.block_until_ready(
        bce_dice_focal_loss(pred3, target3, force_pallas=True, max_tile_rows=8))
    ref3 = _reference(pred3, target3)
    assert out3.shape == pred3.shape
    assert jnp.allclose(out3, ref3, atol=2e-5, rtol=2e-5), "mismatch vs reference (case 3)"

    # Case 4: default dispatch -> small-input pure-XLA fast path.
    out4 = jax.block_until_ready(bce_dice_focal_loss(pred, target))
    assert jnp.allclose(out4, ref, atol=2e-5, rtol=2e-5), "mismatch vs reference (case 4)"

    print("KERNEL_OK")
</pallas_src>

<mosaic_0001>
module attributes {stable_mosaic.version = 11 : i64} {
  func.func @_fused_kernel(%arg0: i32, %arg1: memref<4x512xf32, #tpu.memory_space<vmem>>, %arg2: memref<4x512xf32, #tpu.memory_space<vmem>>, %arg3: memref<4x512xf32, #tpu.memory_space<vmem>>, %arg4: memref<1x8x128xf32, #tpu.memory_space<vmem>>) attributes {dimension_semantics = [#tpu.dimension_semantics<parallel>], iteration_bounds = array<i64: 1>, scalar_prefetch = 0 : i64, scratch_operands = 0 : i64, tpu.core_type = #tpu.core_type<tc>, window_params = [{transform_indices = @transform_0, window_bounds = array<i64: 4, 512>}, {transform_indices = @transform_1, window_bounds = array<i64: 4, 512>}, {transform_indices = @transform_2, window_bounds = array<i64: 4, 512>}, {transform_indices = @transform_3, window_bounds = array<i64: 1, 8, 128>}]} {
    %c0 = arith.constant 0 : index
    %c0_0 = arith.constant 0 : index
    %0 = vector.load %arg1[%c0, %c0_0] : memref<4x512xf32, #tpu.memory_space<vmem>>, vector<4x512xf32>
    %c0_1 = arith.constant 0 : index
    %c0_2 = arith.constant 0 : index
    %1 = vector.load %arg2[%c0_1, %c0_2] : memref<4x512xf32, #tpu.memory_space<vmem>>, vector<4x512xf32>
    %2 = math.absf %0 : vector<4x512xf32>
    %cst = arith.constant 0.000000e+00 : f32
    %3 = vector.broadcast %cst : f32 to vector<4x512xf32>
    %4 = arith.subf %3, %2 : vector<4x512xf32>
    %5 = math.exp %4 : vector<4x512xf32>
    %6 = math.log1p %5 : vector<4x512xf32>
    %cst_3 = arith.constant 0.000000e+00 : f32
    %7 = vector.broadcast %cst_3 : f32 to vector<4x512xf32>
    %8 = arith.maximumf %0, %7 : vector<4x512xf32>
    %9 = arith.addf %8, %6 : vector<4x512xf32>
    %cst_4 = arith.constant 0.000000e+00 : f32
    %10 = vector.broadcast %cst_4 : f32 to vector<4x512xf32>
    %11 = arith.subf %10, %0 : vector<4x512xf32>
    %cst_5 = arith.constant 0.000000e+00 : f32
    %12 = vector.broadcast %cst_5 : f32 to vector<4x512xf32>
    %13 = arith.maximumf %11, %12 : vector<4x512xf32>
    %14 = arith.addf %13, %6 : vector<4x512xf32>
    %15 = arith.mulf %1, %14 : vector<4x512xf32>
    %cst_6 = arith.constant 1.000000e+00 : f32
    %16 = vector.broadcast %cst_6 : f32 to vector<4x512xf32>
    %17 = arith.subf %16, %1 : vector<4x512xf32>
    %18 = arith.mulf %17, %9 : vector<4x512xf32>
    %19 = arith.addf %15, %18 : vector<4x512xf32>
    %cst_7 = arith.constant 0.000000e+00 : f32
    %20 = vector.broadcast %cst_7 : f32 to vector<4x512xf32>
    %21 = arith.subf %20, %14 : vector<4x512xf32>
    %22 = math.exp %21 : vector<4x512xf32>
    %23 = arith.mulf %22, %1 : vector<4x512xf32>
    %cst_8 = arith.constant 1.000000e+00 : f32
    %24 = vector.broadcast %cst_8 : f32 to vector<4x512xf32>
    %25 = arith.subf %24, %22 : vector<4x512xf32>
    %cst_9 = arith.constant 1.000000e+00 : f32
    %26 = vector.broadcast %cst_9 : f32 to vector<4x512xf32>
    %27 = arith.subf %26, %1 : vector<4x512xf32>
    %28 = arith.mulf %25, %27 : vector<4x512xf32>
    %29 = arith.addf %23, %28 : vector<4x512xf32>
    %cst_10 = arith.constant 1.000000e+00 : f32
    %30 = vector.broadcast %cst_10 : f32 to vector<4x512xf32>
    %31 = arith.subf %30, %29 : vector<4x512xf32>
    %32 = arith.mulf %31, %31 : vector<4x512xf32>
    %cst_11 = arith.constant 2.500000e-01 : f32
    %33 = vector.broadcast %cst_11 : f32 to vector<4x512xf32>
    %34 = arith.mulf %33, %1 : vector<4x512xf32>
    %cst_12 = arith.constant 1.000000e+00 : f32
    %35 = vector.broadcast %cst_12 : f32 to vector<4x512xf32>
    %36 = arith.subf %35, %1 : vector<4x512xf32>
    %cst_13 = arith.constant 7.500000e-01 : f32
    %37 = vector.broadcast %cst_13 : f32 to vector<4x512xf32>
    %38 = arith.mulf %37, %36 : vector<4x512xf32>
    %39 = arith.addf %34, %38 : vector<4x512xf32>
    %40 = arith.mulf %39, %19 : vector<4x512xf32>
    %41 = arith.mulf %40, %32 : vector<4x512xf32>
    %c0_14 = arith.constant 0 : index
    %c0_15 = arith.constant 0 : index
    %42 = vector.load %arg3[%c0_14, %c0_15] : memref<4x512xf32, #tpu.memory_space<vmem>>, vector<4x512xf32>
    tpu.vector_store %arg3[%c0_14, %c0_15], %41 {strides = array<i32>} : memref<4x512xf32, #tpu.memory_space<vmem>>, vector<4x512xf32>,
    %cst_16 = arith.constant 2.000000e+00 : f32
    %43 = vector.broadcast %cst_16 : f32 to vector<4x512xf32>
    %44 = arith.mulf %43, %1 : vector<4x512xf32>
    %45 = arith.mulf %44, %14 : vector<4x512xf32>
    %cst_17 = arith.constant 1.000000e+00 : f32
    %46 = vector.broadcast %cst_17 : f32 to vector<4x512xf32>
    %47 = arith.subf %46, %1 : vector<4x512xf32>
    %48 = arith.mulf %47, %9 : vector<4x512xf32>
    %49 = arith.addf %45, %48 : vector<4x512xf32>
    %cst_18 = arith.constant 0.000000e+00 : f32
    %50 = vector.broadcast %cst_18 : f32 to vector<4x512xf32>
    %51 = arith.cmpf oge, %0, %50 : vector<4x512xf32>
    %52 = arith.extui %51 : vector<4x512xi1> to vector<4x512xi32>
    %53 = arith.sitofp %52 : vector<4x512xi32> to vector<4x512xf32>
    %54 = arith.fptosi %1 : vector<4x512xf32> to vector<4x512xi32>
    %55 = arith.sitofp %54 : vector<4x512xi32> to vector<4x512xf32>
    %56 = arith.mulf %53, %55 : vector<4x512xf32>
    %57 = arith.addf %53, %55 : vector<4x512xf32>
    %58 = vector.shape_cast %49 : vector<4x512xf32> to vector<1x4x512xf32>
    %cst_19 = arith.constant dense<0.000000e+00> : vector<1xf32>
    %59 = vector.multi_reduction <add>, %58, %cst_19 [1, 2] : vector<1x4x512xf32> to vector<1xf32>
    %60 = vector.shape_cast %59 : vector<1xf32> to vector<1x1x1xf32>
    %61 = vector.extract %60[0, 0, 0] : f32 from vector<1x1x1xf32>
    %62 = vector.shape_cast %56 : vector<4x512xf32> to vector<1x4x512xf32>
    %cst_20 = arith.constant dense<0.000000e+00> : vector<1xf32>
    %63 = vector.multi_reduction <add>, %62, %cst_20 [1, 2] : vector<1x4x512xf32> to vector<1xf32>
    %64 = vector.shape_cast %63 : vector<1xf32> to vector<1x1x1xf32>
    %65 = vector.extract %64[0, 0, 0] : f32 from vector<1x1x1xf32>
    %66 = vector.shape_cast %57 : vector<4x512xf32> to vector<1x4x512xf32>
    %cst_21 = arith.constant dense<0.000000e+00> : vector<1xf32>
    %67 = vector.multi_reduction <add>, %66, %cst_21 [1, 2] : vector<1x4x512xf32> to vector<1xf32>
    %68 = vector.shape_cast %67 : vector<1xf32> to vector<1x1x1xf32>
    %69 = vector.extract %68[0, 0, 0] : f32 from vector<1x1x1xf32>
    %70 = tpu.iota {dimensions = array<i32: 0>} : vector<8x128xi32>
    %71 = tpu.iota {dimensions = array<i32: 1>} : vector<8x128xi32>
    %c0_i32 = arith.constant 0 : i32
    %72 = vector.broadcast %c0_i32 : i32 to vector<8x128xi32>
    %73 = arith.cmpi eq, %70, %72 : vector<8x128xi32>
    %c0_i32_22 = arith.constant 0 : i32
    %74 = vector.broadcast %c0_i32_22 : i32 to vector<8x128xi32>
    %75 = arith.cmpi eq, %71, %74 : vector<8x128xi32>
    %76 = arith.andi %73, %75 : vector<8x128xi1>
    %cst_23 = arith.constant 0.000000e+00 : f32
    %77 = vector.broadcast %61 : f32 to vector<8x128xf32>
    %78 = vector.broadcast %cst_23 : f32 to vector<8x128xf32>
    %79 = arith.select %76, %77, %78 : vector<8x128xi1>, vector<8x128xf32>
    %c1_i32 = arith.constant 1 : i32
    %80 = vector.broadcast %c1_i32 : i32 to vector<8x128xi32>
    %81 = arith.cmpi eq, %71, %80 : vector<8x128xi32>
    %82 = arith.andi %73, %81 : vector<8x128xi1>
    %cst_24 = arith.constant 0.000000e+00 : f32
    %83 = vector.broadcast %65 : f32 to vector<8x128xf32>
    %84 = vector.broadcast %cst_24 : f32 to vector<8x128xf32>
    %85 = arith.select %82, %83, %84 : vector<8x128xi1>, vector<8x128xf32>
    %86 = arith.addf %79, %85 : vector<8x128xf32>
    %c2_i32 = arith.constant 2 : i32
    %87 = vector.broadcast %c2_i32 : i32 to vector<8x128xi32>
    %88 = arith.cmpi eq, %71, %87 : vector<8x128xi32>
    %89 = arith.andi %73, %88 : vector<8x128xi1>
    %cst_25 = arith.constant 0.000000e+00 : f32
    %90 = vector.broadcast %69 : f32 to vector<8x128xf32>
    %91 = vector.broadcast %cst_25 : f32 to vector<8x128xf32>
    %92 = arith.select %89, %90, %91 : vector<8x128xi1>, vector<8x128xf32>
    %93 = arith.addf %86, %92 : vector<8x128xf32>
    %c0_26 = arith.constant 0 : index
    %c0_27 = arith.constant 0 : index
    %c0_28 = arith.constant 0 : index
    %94 = vector.load %arg4[%c0_26, %c0_27, %c0_28] : memref<1x8x128xf32, #tpu.memory_space<vmem>>, vector<1x8x128xf32>
    %95 = vector.shape_cast %94 : vector<1x8x128xf32> to vector<8x128xf32>
    %96 = vector.shape_cast %93 : vector<8x128xf32> to vector<1x8x128xf32>
    tpu.vector_store %arg4[%c0_26, %c0_27, %c0_28], %96 {strides = array<i32>} : memref<1x8x128xf32, #tpu.memory_space<vmem>>, vector<1x8x128xf32>,
    return
  }
  func.func @transform_0(%arg0: i32) -> (i32, i32) {
    %c0_i32 = arith.constant 0 : i32
    %c0_i32_0 = arith.constant 0 : i32
    return %arg0, %c0_i32 : i32, i32
  }
  func.func @transform_1(%arg0: i32) -> (i32, i32) {
    %c0_i32 = arith.constant 0 : i32
    %c0_i32_0 = arith.constant 0 : i32
    return %arg0, %c0_i32 : i32, i32
  }
  func.func @transform_2(%arg0: i32) -> (i32, i32) {
    %c0_i32 = arith.constant 0 : i32
    %c0_i32_0 = arith.constant 0 : i32
    return %arg0, %c0_i32 : i32, i32
  }
  func.func @transform_3(%arg0: i32) -> (i32, i32, i32) {
    %c0_i32 = arith.constant 0 : i32
    %c0_i32_0 = arith.constant 0 : i32
    %c0_i32_1 = arith.constant 0 : i32
    return %arg0, %c0_i32, %c0_i32_0 : i32, i32, i32
  }
}

</mosaic_0001>

<llo_original>
// kernel: tpu_custom_call.1
$region0: #{tpu_custom_call.1}
  #allocation0 [shape = 'u32[]', space=smem, size = 0x4, offset = 0x4, fixed_abs, tag = 'smem constant byte address 0x4 - core index']
  #allocation1 [shape = 'u32[72,128]{1,0:T(1,128)}', space=vmem, size = 0x9000, scoped, tag = 'internal scratch']
  %s0 = inlined_call_operand.hbm [shape: f32[4,512], index: 0, kind: input, shape index: {}]
  %s1 = inlined_call_operand.hbm [shape: f32[4,512], index: 1, kind: input, shape index: {}]
  %s2 = inlined_call_operand.hbm [shape: f32[4,512], index: 2, kind: output, shape index: {0}]
  %s3 = inlined_call_operand.hbm [shape: f32[1,8,128], index: 3, kind: output, shape index: {1}]
  %4 = xla_tuple %s2, %s3
  %s5 = sld [smem:[#allocation0]]
  $region34: #{tpu_custom_call.1} parent=0
    _
  %s7 = ssub.s32 1, %s5
  %s8 = scalar_select 0, %s7, %s5
  $region1: #{tpu_custom_call.1} parent=0
    #allocation2 [shape = 'u8[8192]{0}', space=vmem, size = 0x2000, scoped, tag = 'input window, operand 0, single buffered']
    #allocation3 [shape = 's32[1]{0}', space=sflag, size = 0x4, scoped, tag = 'scoped memory for tpu_custom_call.1']
    #allocation4 [shape = 's32[1]{0}', space=sflag, size = 0x4, scoped, tag = 'scoped memory for tpu_custom_call.1']
    #allocation5 [shape = 'u8[8192]{0}', space=vmem, size = 0x2000, scoped, tag = 'input window, operand 1, single buffered']
    #allocation6 [shape = 's32[1]{0}', space=sflag, size = 0x4, scoped, tag = 'scoped memory for tpu_custom_call.1']
    #allocation7 [shape = 'u8[8192]{0}', space=vmem, size = 0x2000, scoped, tag = 'output window, operand 0, single buffered']
    #allocation8 [shape = 'u8[4096]{0}', space=vmem, size = 0x1000, scoped, tag = 'output window, operand 1, single buffered']
    #allocation9 [shape = 's32[1]{0}', space=sflag, size = 0x4, scoped, tag = 'scoped memory for tpu_custom_call.1']
    %9 = vsyncpa [#allocation3], 0
    %10 = vsyncpa [#allocation6], 0
    %11 = vsyncpa [#allocation4], 0
    %12 = vsyncpa [#allocation9], 0
    // Predicated region
    $region2: #{tpu_custom_call.1} parent=1 // pred_check
      _
    $region3: #{tpu_custom_call.1} parent=1 // pred_check_branch
      %14 = sbr.rel (0) target = $region5
    $region4: #{tpu_custom_call.1} parent=1 // pred_region
      %16 = vsyncadd [#allocation3], 0
      %s18 = sshll.u32 %s0, 4
      %s19 = int_to_ptr.hbm [resolvable:$true] %s18
      %s20 = sshll.u32 [#allocation2], 4
      %s21 = int_to_ptr.vmem [resolvable:$true] %s20
      %23 = dma.hbm_to_vmem [thread:$0]  %s19, 256, %s21, [#allocation3]
    $region5: #{tpu_custom_call.1} parent=1 // pred_fallthru
      _
    // Predicated region
    $region6: #{tpu_custom_call.1} parent=1 // pred_check
      _
    $region7: #{tpu_custom_call.1} parent=1 // pred_check_branch
      %25 = sbr.rel (0) target = $region9
    $region8: #{tpu_custom_call.1} parent=1 // pred_region
      %27 = vsyncadd [#allocation6], 0
      %s29 = sshll.u32 %s1, 4
      %s30 = int_to_ptr.hbm [resolvable:$true] %s29
      %s31 = sshll.u32 [#allocation5], 4
      %s32 = int_to_ptr.vmem [resolvable:$true] %s31
      %34 = dma.hbm_to_vmem [thread:$0]  %s30, 256, %s32, [#allocation6]
    $region9: #{tpu_custom_call.1} parent=1 // pred_fallthru
      _
    // Predicated region
    $region10: #{tpu_custom_call.1} parent=1 // pred_check
      _
    $region11: #{tpu_custom_call.1} parent=1 // pred_check_branch
      %36 = sbr.rel (0) target = $region13
    $region12: #{tpu_custom_call.1} parent=1 // pred_region
      %38 = dma.done [#allocation3], 256
    $region13: #{tpu_custom_call.1} parent=1 // pred_fallthru
      _
    // Predicated region
    $region14: #{tpu_custom_call.1} parent=1 // pred_check
      _
    $region15: #{tpu_custom_call.1} parent=1 // pred_check_branch
      %40 = sbr.rel (0) target = $region17
    $region16: #{tpu_custom_call.1} parent=1 // pred_region
      %42 = dma.done [#allocation6], 256
    $region17: #{tpu_custom_call.1} parent=1 // pred_fallthru
      _
    %v43 = vld [vmem:[#allocation2] sm:$0xff]
    %v44 = vld [vmem:[#allocation2 + $0x8] sm:$0xff]
    %v45 = vld [vmem:[#allocation5] sm:$0xff]
    %v46 = vld [vmem:[#allocation5 + $0x8] sm:$0xff]
    %v47 = vand.u32 2147483647, %v43
    %v48 = vand.u32 2147483647, %v44
    %v49 = vsub.f32 0.0, %v47
    %v50 = vsub.f32 0.0, %v48
    %v51 = vmul.f32 %v49, 1.442695
    %v52 = vpow.pop %v51
    %v53 = vmul.f32 %v50, 1.442695
    %v54 = vpow.pop %v53
    %v55 = vadd.f32 %v52, 1.0
    %v56 = vlog2.pop %v55
    %v57 = vmul.f32 %v56, 0.6931472
    %v58 = vmul.f32 -0.5, %v52
    %v59 = vadd.f32 %v58, 1.0
    %v60 = vmul.f32 %v59, %v52
    %v61 = vand.u32 2147483647, %v52
    %vm62 = vcmp.lt.f32.partialorder %v61, 0.0004427343
    %v63 = vsel %vm62, %v60, %v57
    %v64 = vadd.f32 %v54, 1.0
    %v65 = vlog2.pop %v64
    %v66 = vmul.f32 %v65, 0.6931472
    %v67 = vmul.f32 -0.5, %v54
    %v68 = vadd.f32 %v67, 1.0
    %v69 = vmul.f32 %v68, %v54
    %v70 = vand.u32 2147483647, %v54
    %vm71 = vcmp.lt.f32.partialorder %v70, 0.0004427343
    %v72 = vsel %vm71, %v69, %v66
    %v73 = vmax.f32 %v43, 0.0
    %v74 = vmax.f32 %v44, 0.0
    %v75 = vadd.f32 %v73, %v63
    %v76 = vadd.f32 %v74, %v72
    %v77 = vsub.f32 0.0, %v43
    %v78 = vsub.f32 0.0, %v44
    %v79 = vmax.f32 %v77, 0.0
    %v80 = vmax.f32 %v78, 0.0
    %v81 = vadd.f32 %v79, %v63
    %v82 = vadd.f32 %v80, %v72
    %v83 = vmul.f32 %v45, %v81
    %v84 = vmul.f32 %v46, %v82
    %v85 = vsub.f32 1.0, %v45
    %v86 = vsub.f32 1.0, %v46
    %v87 = vmul.f32 %v85, %v75
    %v88 = vmul.f32 %v86, %v76
    %v89 = vadd.f32 %v83, %v87
    %v90 = vadd.f32 %v84, %v88
    %v91 = vsub.f32 0.0, %v81
    %v92 = vsub.f32 0.0, %v82
    %v93 = vmul.f32 %v91, 1.442695
    %v94 = vpow.pop %v93
    %v95 = vmul.f32 %v92, 1.442695
    %v96 = vpow.pop %v95
    %v97 = vmul.f32 %v94, %v45
    %v98 = vmul.f32 %v96, %v46
    %v99 = vsub.f32 1.0, %v94
    %v100 = vsub.f32 1.0, %v96
    %v101 = vmul.f32 %v99, %v85
    %v102 = vmul.f32 %v100, %v86
    %v103 = vadd.f32 %v97, %v101
    %v104 = vadd.f32 %v98, %v102
    %v105 = vsub.f32 1.0, %v103
    %v106 = vsub.f32 1.0, %v104
    %v107 = vmul.f32 %v105, %v105
    %v108 = vmul.f32 %v106, %v106
    %v109 = vmul.f32 %v45, 0.25
    %v110 = vmul.f32 %v46, 0.25
    %v111 = vmul.f32 %v85, 0.75
    %v112 = vmul.f32 %v86, 0.75
    %v113 = vadd.f32 %v109, %v111
    %v114 = vadd.f32 %v110, %v112
    %v115 = vmul.f32 %v113, %v89
    %v116 = vmul.f32 %v114, %v90
    %v117 = vmul.f32 %v115, %v107
    %v118 = vmul.f32 %v116, %v108
    %119 = vst [vmem:[#allocation7] sm:$0xff] %v117
    %120 = vst [vmem:[#allocation7 + $0x8] sm:$0xff] %v118
    %v121 = vmul.f32 %v45, 2.0
    %v122 = vmul.f32 %v46, 2.0
    %v123 = vmul.f32 %v121, %v81
    %v124 = vmul.f32 %v122, %v82
    %v125 = vadd.f32 %v123, %v87
    %v126 = vadd.f32 %v124, %v88
    %vm127 = vcmp.ge.f32.partialorder %v43, 0.0
    %vm128 = vcmp.ge.f32.partialorder %v44, 0.0
    %v129 = vsel %vm127, 1, 0
    %v130 = vsel %vm128, 1, 0
    %v131 = vcvt.s32.f32 %v129
    %v132 = vcvt.s32.f32 %v130
    %v133 = vcvt.f32.s32.to.zero.pseudo %v45
    %v134 = vcvt.f32.s32.to.zero.pseudo %v46
    %v135 = vcvt.s32.f32 %v133
    %v136 = vcvt.s32.f32 %v134
    %v137 = vmul.f32 %v131, %v135
    %v138 = vmul.f32 %v132, %v136
    %v139 = vadd.f32 %v131, %v135
    %v140 = vadd.f32 %v132, %v136
    %143 = vst [vmem:[#allocation1] ss:$2 sm:$0xff] %v125
    %s144 = scalar_lea.vmem [#allocation1], 16
    %145 = vst [vmem:[%s144] ss:$2 sm:$0xff] %v126
    %v146 = vld.sshfl [vmem:[#allocation1] sm:$0xff pattern:$0x75316420]
    %v147 = vld.sshfl [vmem:[#allocation1 + $0x8] sm:$0xff pattern:$0x75316420]
    %v148 = vld.sshfl [vmem:[#allocation1 + $0x10] sm:$0xff pattern:$0x75316420]
    %v149 = vld.sshfl [vmem:[#allocation1 + $0x18] sm:$0xff pattern:$0x75316420]
    %vm154 = vcmask 1043456
    %v155 = vsel %vm154, %v146, 0.0
    %v156 = vsel %vm154, %v147, 0.0
    %v157 = vadd.f32 %v155, %v156
    %v158 = vsel %vm154, %v148, 0.0
    %v159 = vadd.f32 %v157, %v158
    %v160 = vsel %vm154, %v149, 0.0
    %v161 = vadd.f32 %v159, %v160
    %162 = vadd.xlane.f32.xlu0 %v161
    %v163 = vpop.xlane.xlu0 %162
    %v164 = vrot.slane %v163, 4
    %v165 = vadd.f32 %v163, %v164
    %v166 = vrot.slane %v165, 2
    %v167 = vadd.f32 %v165, %v166
    %v168 = vrot.slane %v167, 1
    %v169 = vadd.f32 %v167, %v168
    %s170 = vtos %v169
    %173 = vst [vmem:[#allocation1] ss:$2 sm:$0xff] %v137
    %s174 = scalar_lea.vmem [#allocation1], 16
    %175 = vst [vmem:[%s174] ss:$2 sm:$0xff] %v138
    %v176 = vld.sshfl [vmem:[#allocation1] sm:$0xff pattern:$0x75316420]
    %v177 = vld.sshfl [vmem:[#allocation1 + $0x8] sm:$0xff pattern:$0x75316420]
    %v178 = vld.sshfl [vmem:[#allocation1 + $0x10] sm:$0xff pattern:$0x75316420]
    %v179 = vld.sshfl [vmem:[#allocation1 + $0x18] sm:$0xff pattern:$0x75316420]
    %v184 = vsel %vm154, %v176, 0.0
    %v185 = vsel %vm154, %v177, 0.0
    %v186 = vadd.f32 %v184, %v185
    %v187 = vsel %vm154, %v178, 0.0
    %v188 = vadd.f32 %v186, %v187
    %v189 = vsel %vm154, %v179, 0.0
    %v190 = vadd.f32 %v188, %v189
    %191 = vadd.xlane.f32.xlu0 %v190
    %v192 = vpop.xlane.xlu0 %191
    %v193 = vrot.slane %v192, 4
    %v194 = vadd.f32 %v192, %v193
    %v195 = vrot.slane %v194, 2
    %v196 = vadd.f32 %v194, %v195
    %v197 = vrot.slane %v196, 1
    %v198 = vadd.f32 %v196, %v197
    %s199 = vtos %v198
    %202 = vst [vmem:[#allocation1] ss:$2 sm:$0xff] %v139
    %s203 = scalar_lea.vmem [#allocation1], 16
    %204 = vst [vmem:[%s203] ss:$2 sm:$0xff] %v140
    %v205 = vld.sshfl [vmem:[#allocation1] sm:$0xff pattern:$0x75316420]
    %v206 = vld.sshfl [vmem:[#allocation1 + $0x8] sm:$0xff pattern:$0x75316420]
    %v207 = vld.sshfl [vmem:[#allocation1 + $0x10] sm:$0xff pattern:$0x75316420]
    %v208 = vld.sshfl [vmem:[#allocation1 + $0x18] sm:$0xff pattern:$0x75316420]
    %v213 = vsel %vm154, %v205, 0.0
    %v214 = vsel %vm154, %v206, 0.0
    %v215 = vadd.f32 %v213, %v214
    %v216 = vsel %vm154, %v207, 0.0
    %v217 = vadd.f32 %v215, %v216
    %v218 = vsel %vm154, %v208, 0.0
    %v219 = vadd.f32 %v217, %v218
    %220 = vadd.xlane.f32.xlu0 %v219
    %v221 = vpop.xlane.xlu0 %220
    %v222 = vrot.slane %v221, 4
    %v223 = vadd.f32 %v221, %v222
    %v224 = vrot.slane %v223, 2
    %v225 = vadd.f32 %v223, %v224
    %v226 = vrot.slane %v225, 1
    %v227 = vadd.f32 %v225, %v226
    %s228 = vtos %v227
    %v229 = vlaneseq
    %v230 = vshrl.u32 %v229, 7
    %v231 = vlaneseq
    %v232 = vand.u32 %v231, 127
    %vm233 = vcmp.eq.s32.totalorder %v230, 0
    %vm234 = vcmp.eq.s32.totalorder %v232, 0
    %vm235 = vmand %vm233, %vm234
    %v236 = vstv %s170
    %v237 = vsel %vm235, %v236, 0.0
    %vm238 = vcmp.eq.s32.totalorder %v232, 1
    %vm239 = vmand %vm233, %vm238
    %v240 = vstv %s199
    %v241 = vsel %vm239, %v240, 0.0
    %v242 = vadd.f32 %v237, %v241
    %vm243 = vcmp.eq.s32.totalorder %v232, 2
    %vm244 = vmand %vm233, %vm243
    %v245 = vstv %s228
    %v246 = vsel %vm244, %v245, 0.0
    %v247 = vadd.f32 %v242, %v246
    %248 = vst [vmem:[#allocation8] sm:$0xff] %v247
    // Predicated region
    $region18: #{tpu_custom_call.1} parent=1 // pred_check
      _
    $region19: #{tpu_custom_call.1} parent=1 // pred_check_branch
      %250 = sbr.rel (0) target = $region21
    $region20: #{tpu_custom_call.1} parent=1 // pred_region
      %252 = vsyncadd [#allocation4], 0
      %s254 = sshll.u32 [#allocation7], 4
      %s255 = int_to_ptr.vmem [resolvable:$true] %s254
      %s256 = sshll.u32 %s2, 4
      %s257 = int_to_ptr.hbm [resolvable:$true] %s256
      %259 = dma.vmem_to_hbm [thread:$0]  %s255, 256, %s257, [#allocation4]
    $region21: #{tpu_custom_call.1} parent=1 // pred_fallthru
      _
    // Predicated region
    $region22: #{tpu_custom_call.1} parent=1 // pred_check
      _
    $region23: #{tpu_custom_call.1} parent=1 // pred_check_branch
      %261 = sbr.rel (0) target = $region25
    $region24: #{tpu_custom_call.1} parent=1 // pred_region
      %263 = vsyncadd [#allocation9], 0
      %s265 = sshll.u32 [#allocation8], 4
      %s266 = int_to_ptr.vmem [resolvable:$true] %s265
      %s267 = sshll.u32 %s3, 4
      %s268 = int_to_ptr.hbm [resolvable:$true] %s267
      %270 = dma.vmem_to_hbm [thread:$0]  %s266, 128, %s268, [#allocation9]
    $region25: #{tpu_custom_call.1} parent=1 // pred_fallthru
      _
    // Predicated region
    $region26: #{tpu_custom_call.1} parent=1 // pred_check
      _
    $region27: #{tpu_custom_call.1} parent=1 // pred_check_branch
      %272 = sbr.rel (0) target = $region29
    $region28: #{tpu_custom_call.1} parent=1 // pred_region
      %274 = dma.done [#allocation4], 256
    $region29: #{tpu_custom_call.1} parent=1 // pred_fallthru
      _
    // Predicated region
    $region30: #{tpu_custom_call.1} parent=1 // pred_check
      _
    $region31: #{tpu_custom_call.1} parent=1 // pred_check_branch
      %276 = sbr.rel (0) target = $region33
    $region32: #{tpu_custom_call.1} parent=1 // pred_region
      %278 = dma.done [#allocation9], 128
    $region33: #{tpu_custom_call.1} parent=1 // pred_fallthru
      _
    %279 = vsyncpa [#allocation3], 1
    %280 = vsyncpa [#allocation6], 1
    %281 = vsyncpa [#allocation4], 1
    %282 = vsyncpa [#allocation9], 1

</llo_original>
